<compile_context>
chip_gen: v7x
topology: tpu7x:2x2x1
jax: 0.10.0
libtpu: 0.0.40
codegen_flags: <defaults>
</compile_context>

<pallas_src>
import functools

import jax
import jax.numpy as jnp
from jax.experimental import pallas as pl
from jax.experimental.pallas import tpu as pltpu


def _swish_kernel(x_ref, o_ref, *, compute_dtype):
    x = x_ref[...].astype(compute_dtype)
    # sigmoid(x) == 0.5 * (tanh(x/2) + 1): single EUP op, avoids exp + VPU divide.
    sig = 0.5 * (jnp.tanh(0.5 * x) + 1.0)
    o_ref[...] = (x * sig).astype(o_ref.dtype)


def _round_up(v, m):
    return ((v + m - 1) // m) * m


def _sublane_multiple(dtype):
    # dtype-native sublane packing: 8 rows for 4-byte, 16 for 2-byte, 32 for 1-byte.
    return 8 * max(1, 4 // jnp.dtype(dtype).itemsize)


def _vmem_capacity_bytes():
    try:
        info = pltpu.get_tpu_info()
        cap = getattr(info, "vmem_capacity_bytes", None)
        return int(cap) if cap else None
    except Exception:
        return None


def _pick_compute_dtype(dtype):
    """bf16-native compute on v6e/v7x; f32 upcast on v5e or when chip is unknown."""
    if jnp.dtype(dtype) != jnp.dtype(jnp.bfloat16):
        return jnp.float32
    try:
        info = pltpu.get_tpu_info()
        ver = str(getattr(info, "chip_version", "") or getattr(info, "version", ""))
        if ver and "5" not in ver:   # v5e/v5p have no bf16 VPU/EUP
            return jnp.bfloat16
    except Exception:
        pass
    return jnp.float32


def _pick_lane_width(total, max_lane):
    """Largest multiple of 128 (<= max_lane) dividing `total` exactly, preferring
    widths that still leave at least 8 rows. None if total is not a 128-multiple."""
    cands = [c for c in range(128, min(max_lane, total) + 1, 128) if total % c == 0]
    if not cands:
        return None
    wide = [c for c in cands if total // c >= 8]
    return max(wide) if wide else max(cands)


def _chip_budgets():
    """(target_block_bytes, vmem_limit_bytes) derived from the chip's VMEM size."""
    cap = _vmem_capacity_bytes()
    if cap is None:
        return 8 << 20, 48 << 20          # safe everywhere (<= v7x 64 MiB physical)
    if cap <= (80 << 20):                  # v7x-class: 64 MiB physical VMEM
        return 10 << 20, 52 << 20
    return 16 << 20, 96 << 20              # v5e/v6e: 128 MiB physical VMEM


def _swish_2d(x2):
    """Run the kernel on a lane-dense 2D view (C is the full, 128-multiple width)."""
    R, C = x2.shape
    itemsize = jnp.dtype(x2.dtype).itemsize
    sub = _sublane_multiple(x2.dtype)
    compute_dtype = _pick_compute_dtype(x2.dtype)
    target_blk, vmem_limit = _chip_budgets()

    # Byte-targeted row block (keeps ~85%+ of HBM roofline even for narrow C).
    tr = max(sub, min(target_blk // (C * itemsize), R))
    tr = _round_up(tr, sub)
    if tr >= R:
        if R >= 2 * sub:
            # Split the single block so the "parallel" axis has >=2 steps
            # (feeds both v7x TensorCores and enables prefetch/writeback overlap).
            tr = _round_up(-(-R // 2), sub)
        else:
            tr = R  # single short block == full row dim (always layout-legal)

    grid = (pl.cdiv(R, tr),)  # ragged last block handled by Pallas' cdiv masking
    n = R * C
    cost = pl.CostEstimate(flops=5 * n, transcendentals=n,
                           bytes_accessed=2 * n * itemsize)

    return pl.pallas_call(
        functools.partial(_swish_kernel, compute_dtype=compute_dtype),
        out_shape=jax.ShapeDtypeStruct((R, C), x2.dtype),
        grid_spec=pltpu.PrefetchScalarGridSpec(
            num_scalar_prefetch=0,
            grid=grid,
            in_specs=[pl.BlockSpec((tr, C), lambda i: (i, 0))],
            out_specs=pl.BlockSpec((tr, C), lambda i: (i, 0)),
        ),
        compiler_params=pltpu.CompilerParams(
            dimension_semantics=("parallel",),
            vmem_limit_bytes=int(vmem_limit),
        ),
        cost_estimate=cost,
    )(x2)


def swish(x, *, min_kernel_bytes=1 << 20, max_lane=2048):
    """Elementwise Swish (x * sigmoid(x)) for any shape/dtype."""
    orig_shape = x.shape
    dtype = x.dtype
    total = int(x.size)
    if total == 0:
        return x

    # Tiny tensors: XLA already fuses x*sigmoid(x) into one HBM pass; a one-block
    # pallas_call only adds launch + per-step overhead.
    if total * jnp.dtype(dtype).itemsize < min_kernel_bytes:
        xf = x.astype(jnp.float32)
        return (xf * jax.nn.sigmoid(xf)).astype(dtype)

    flat = x.reshape(-1)
    C = _pick_lane_width(total, max_lane)
    if C is None:
        # Total not a multiple of 128: single zero-pad to a lane-dense width,
        # one kernel pass, then slice (no per-chunk concatenate passes).
        C = min(max_lane, 512)
        padded = _round_up(total, C)
        flat = jnp.pad(flat, (0, padded - total))
        out = _swish_2d(flat.reshape(padded // C, C)).reshape(-1)[:total]
        return out.reshape(orig_shape)

    return _swish_2d(flat.reshape(total // C, C)).reshape(orig_shape)


if __name__ == "__main__":
    key = jax.random.PRNGKey(0)
    k0, k1, k2 = jax.random.split(key, 3)

    # NCHW feature map, consistent with PyTorch conv-style usage of Swish.
    x = jax.random.normal(k0, (2, 4, 16, 16), dtype=jnp.float32)
    y = swish(x, min_kernel_bytes=0)          # force the Pallas path at this small size
    jax.block_until_ready(y)
    y_ref = x * jax.nn.sigmoid(x)
    assert y.shape == x.shape and y.dtype == x.dtype
    assert jnp.allclose(y, y_ref, atol=1e-5, rtol=1e-5), "mismatch vs reference"

    # Ragged total size (not a multiple of 128) exercises the pad-and-slice path.
    x2 = jax.random.normal(k1, (3, 5, 7, 11), dtype=jnp.float32)
    y2 = swish(x2, min_kernel_bytes=0)
    jax.block_until_ready(y2)
    y2_ref = x2 * jax.nn.sigmoid(x2)
    assert y2.shape == x2.shape and y2.dtype == x2.dtype
    assert jnp.allclose(y2, y2_ref, atol=1e-5, rtol=1e-5), "mismatch vs reference (ragged)"

    # bf16 path (bf16-native compute on v6e/v7x, f32 upcast on v5e/unknown).
    x3 = jax.random.normal(k2, (2, 4, 16, 16), dtype=jnp.bfloat16)
    y3 = swish(x3, min_kernel_bytes=0)
    jax.block_until_ready(y3)
    x3f = x3.astype(jnp.float32)
    y3_ref = (x3f * jax.nn.sigmoid(x3f)).astype(jnp.bfloat16)
    assert y3.shape == x3.shape and y3.dtype == x3.dtype
    assert jnp.allclose(y3.astype(jnp.float32), y3_ref.astype(jnp.float32),
                        atol=6e-2, rtol=6e-2), "mismatch vs reference (bf16)"

    # Default routing: tiny tensors go through fused XLA (no kernel launch).
    y_small = swish(x)
    jax.block_until_ready(y_small)
    assert jnp.allclose(y_small, y_ref, atol=1e-5, rtol=1e-5), "mismatch (small-path)"

    print("KERNEL_OK")
</pallas_src>

<mosaic_0001>
module attributes {stable_mosaic.version = 11 : i64} {
  func.func @_swish_kernel(%arg0: i32, %arg1: memref<8x256xf32, #tpu.memory_space<vmem>>, %arg2: memref<8x256xf32, #tpu.memory_space<vmem>>) attributes {dimension_semantics = [#tpu.dimension_semantics<parallel>], iteration_bounds = array<i64: 1>, scalar_prefetch = 0 : i64, scratch_operands = 0 : i64, tpu.core_type = #tpu.core_type<tc>, window_params = [{transform_indices = @transform_0, window_bounds = array<i64: 8, 256>}, {transform_indices = @transform_1, window_bounds = array<i64: 8, 256>}]} {
    %c0 = arith.constant 0 : index
    %c0_0 = arith.constant 0 : index
    %0 = vector.load %arg1[%c0, %c0_0] : memref<8x256xf32, #tpu.memory_space<vmem>>, vector<8x256xf32>
    %cst = arith.constant 5.000000e-01 : f32
    %1 = vector.broadcast %cst : f32 to vector<8x256xf32>
    %2 = arith.mulf %1, %0 : vector<8x256xf32>
    %3 = math.tanh %2 : vector<8x256xf32>
    %cst_1 = arith.constant 1.000000e+00 : f32
    %4 = vector.broadcast %cst_1 : f32 to vector<8x256xf32>
    %5 = arith.addf %3, %4 : vector<8x256xf32>
    %cst_2 = arith.constant 5.000000e-01 : f32
    %6 = vector.broadcast %cst_2 : f32 to vector<8x256xf32>
    %7 = arith.mulf %6, %5 : vector<8x256xf32>
    %8 = arith.mulf %0, %7 : vector<8x256xf32>
    %c0_3 = arith.constant 0 : index
    %c0_4 = arith.constant 0 : index
    %9 = vector.load %arg2[%c0_3, %c0_4] : memref<8x256xf32, #tpu.memory_space<vmem>>, vector<8x256xf32>
    tpu.vector_store %arg2[%c0_3, %c0_4], %8 {strides = array<i32>} : memref<8x256xf32, #tpu.memory_space<vmem>>, vector<8x256xf32>,
    return
  }
  func.func @transform_0(%arg0: i32) -> (i32, i32) {
    %c0_i32 = arith.constant 0 : i32
    %c0_i32_0 = arith.constant 0 : i32
    return %arg0, %c0_i32 : i32, i32
  }
  func.func @transform_1(%arg0: i32) -> (i32, i32) {
    %c0_i32 = arith.constant 0 : i32
    %c0_i32_0 = arith.constant 0 : i32
    return %arg0, %c0_i32 : i32, i32
  }
}

</mosaic_0001>

<llo_original>
// kernel: tpu_custom_call.1
$region0: #{tpu_custom_call.1}
  #allocation0 [shape = 'u32[]', space=smem, size = 0x4, offset = 0x4, fixed_abs, tag = 'smem constant byte address 0x4 - core index']
  #allocation1 [shape = 'u32[144,128]{1,0:T(1,128)}', space=vmem, size = 0x12000, scoped, tag = 'internal scratch']
  %s0 = inlined_call_operand.hbm [shape: f32[8,256], index: 0, kind: input, shape index: {}]
  %s1 = inlined_call_operand.hbm [shape: f32[8,256], index: 1, kind: output, shape index: {}]
  %s2 = sld [smem:[#allocation0]]
  $region18: #{tpu_custom_call.1} parent=0
    _
  %s4 = ssub.s32 1, %s2
  %s5 = scalar_select 0, %s4, %s2
  $region1: #{tpu_custom_call.1} parent=0
    #allocation2 [shape = 'u8[8192]{0}', space=vmem, size = 0x2000, scoped, tag = 'input window, operand 0, single buffered']
    #allocation3 [shape = 's32[1]{0}', space=sflag, size = 0x4, scoped, tag = 'scoped memory for tpu_custom_call.1']
    #allocation4 [shape = 's32[1]{0}', space=sflag, size = 0x4, scoped, tag = 'scoped memory for tpu_custom_call.1']
    #allocation5 [shape = 'u8[8192]{0}', space=vmem, size = 0x2000, scoped, tag = 'output window, operand 0, single buffered']
    %6 = vsyncpa [#allocation3], 0
    %7 = vsyncpa [#allocation4], 0
    // Predicated region
    $region2: #{tpu_custom_call.1} parent=1 // pred_check
      _
    $region3: #{tpu_custom_call.1} parent=1 // pred_check_branch
      %9 = sbr.rel (0) target = $region5
    $region4: #{tpu_custom_call.1} parent=1 // pred_region
      %s11 = ssub.s32 256, 256
      %12 = vsyncadd [#allocation3], %s11
      %s14 = sshll.u32 [#allocation2], 4
      %s15 = int_to_ptr.vmem [resolvable:$true] %s14
      %17 = dma.hbm_to_vmem [thread:$0]  %s0, 256, %s15, [#allocation3]
    $region5: #{tpu_custom_call.1} parent=1 // pred_fallthru
      _
    // Predicated region
    $region6: #{tpu_custom_call.1} parent=1 // pred_check
      _
    $region7: #{tpu_custom_call.1} parent=1 // pred_check_branch
      %19 = sbr.rel (0) target = $region9
    $region8: #{tpu_custom_call.1} parent=1 // pred_region
      %20 = dma.done [#allocation3], 256
    $region9: #{tpu_custom_call.1} parent=1 // pred_fallthru
      _
    %v21 = vld [vmem:[#allocation2] sm:$0xff]
    %v22 = vld [vmem:[#allocation2 + $0x8] sm:$0xff]
    %v23 = vmul.f32 %v21, 0.5
    %v24 = vmul.f32 %v22, 0.5
    %v25 = vtanh.pop %v23
    %v26 = vtanh.pop %v24
    %v27 = vadd.f32 %v25, 1.0
    %v28 = vadd.f32 %v26, 1.0
    %v29 = vmul.f32 %v27, 0.5
    %v30 = vmul.f32 %v28, 0.5
    %v31 = vmul.f32 %v21, %v29
    %v32 = vmul.f32 %v22, %v30
    %33 = vst [vmem:[#allocation5] sm:$0xff] %v31
    %34 = vst [vmem:[#allocation5 + $0x8] sm:$0xff] %v32
    // Predicated region
    $region10: #{tpu_custom_call.1} parent=1 // pred_check
      _
    $region11: #{tpu_custom_call.1} parent=1 // pred_check_branch
      %36 = sbr.rel (0) target = $region13
    $region12: #{tpu_custom_call.1} parent=1 // pred_region
      %s38 = ssub.s32 256, 256
      %39 = vsyncadd [#allocation4], %s38
      %s41 = sshll.u32 [#allocation5], 4
      %s42 = int_to_ptr.vmem [resolvable:$true] %s41
      %44 = dma.vmem_to_hbm [thread:$0]  %s42, 256, %s1, [#allocation4]
    $region13: #{tpu_custom_call.1} parent=1 // pred_fallthru
      _
    // Predicated region
    $region14: #{tpu_custom_call.1} parent=1 // pred_check
      _
    $region15: #{tpu_custom_call.1} parent=1 // pred_check_branch
      %46 = sbr.rel (0) target = $region17
    $region16: #{tpu_custom_call.1} parent=1 // pred_region
      %47 = dma.done [#allocation4], 256
    $region17: #{tpu_custom_call.1} parent=1 // pred_fallthru
      _
    %48 = vsyncpa [#allocation3], 1
    %49 = vsyncpa [#allocation4], 1

</llo_original>
